<compile_context>
chip_gen: v5e
topology: v5e:2x2
jax: 0.10.0
libtpu: 0.0.40
codegen_flags: <defaults>
</compile_context>

<pallas_src>
import functools

import jax
import jax.numpy as jnp
from jax.experimental import pallas as pl
from jax.experimental.pallas import tpu as pltpu


def _round_up(x, m):
    return (x + m - 1) // m * m


def _textcnn_kernel(k_max, x_ref, w_ref, b_ref, mask_ref, fc_wt_ref, fc_b_ref,
                    out_ref):
    """One batch tile.

    x_ref    : (TB, L_pad, E)       embedded tokens, channels-last, compute dtype
    w_ref    : (k_max*E, NF_pad)    fused conv weights (taps+kernel-sizes fused)
    b_ref    : (1, NF_pad)          fused conv bias, f32
    mask_ref : (Lout_pad, NF_pad)   0/1 validity mask (per filter Lout), f32
    fc_wt    : (NF_pad, C_pad)      fc weight, pre-transposed + zero-padded
    fc_b     : (1, C_pad)           fc bias, f32
    out_ref  : (TB, C_pad)          logits, f32
    """
    x = x_ref[...]                               # (TB, L_pad, E)
    TB, L_pad, E = x.shape
    Lout = L_pad - (k_max - 1)                   # padded Lout (multiple of 8)

    # im2col: concat the k_max tap-shifted windows along the feature axis.
    taps = [x[:, j:j + Lout, :] for j in range(k_max)]
    slab = jnp.concatenate(taps, axis=-1)        # (TB, Lout, k_max*E)
    slab = slab.reshape(TB * Lout, k_max * E)

    # Single fused conv matmul (all batches, taps, kernel sizes). f32 accumulate.
    conv = jnp.dot(slab, w_ref[...],
                   preferred_element_type=jnp.float32)   # (TB*Lout, NF_pad)
    conv = jnp.maximum(conv + b_ref[...], 0.0)           # bias + relu, once
    # Zero out invalid time steps / padded filters (safe: post-ReLU max >= 0).
    conv = conv.reshape(TB, Lout, -1) * mask_ref[...][None]
    feat = jnp.max(conv, axis=1)                          # (TB, NF_pad)

    # dropout == identity (eval mode)
    logits = jnp.dot(feat.astype(fc_wt_ref.dtype), fc_wt_ref[...],
                     preferred_element_type=jnp.float32) + fc_b_ref[...]
    out_ref[...] = logits.astype(out_ref.dtype)


def textcnn_forward(tokens, length, params, kernel_sizes, *,
                    compute_dtype=jnp.float32, batch_tile=8):
    """Embedding gather + parameter layout glue, then one gridded pallas_call."""
    del length  # unused, as in the PyTorch forward
    emb = params["embedding"]                      # (V, E)
    B, L = tokens.shape
    E = emb.shape[1]
    C, NF = params["fc_w"].shape                   # NF = len(ks) * F
    n = len(kernel_sizes)
    F = NF // n
    k_max, k_min = max(kernel_sizes), min(kernel_sizes)

    Lout_max = L - k_min + 1
    Lout_pad = _round_up(Lout_max, 8)              # sublane-aligned time axis
    L_pad = Lout_pad + k_max - 1
    NF_pad = _round_up(NF, 128)                    # lane-dense conv output
    C_pad = _round_up(C, 128)                      # lane-dense logits store

    # Embedding gather (plain-JAX glue), cast operands for the MXU.
    x = jnp.take(emb, tokens, axis=0).astype(compute_dtype)   # (B, L, E)

    TB = min(batch_tile, B)
    B_pad = _round_up(B, TB)
    x = jnp.pad(x, ((0, B_pad - B), (0, L_pad - L), (0, 0)))

    # Fused conv weight: W[j*E + e, g*F + f] = conv_w[g][f, e, j], zero taps
    # beyond k_g, zero filters beyond NF.
    w_cols = []
    for w, k in zip(params["conv_w"], kernel_sizes):
        wt = jnp.transpose(w, (2, 1, 0))                       # (k, E, F)
        wt = jnp.pad(wt, ((0, k_max - k), (0, 0), (0, 0)))     # -> (k_max, E, F)
        w_cols.append(wt.reshape(k_max * E, F))
    w_fused = jnp.concatenate(w_cols, axis=1)                  # (k_max*E, NF)
    w_fused = jnp.pad(w_fused, ((0, 0), (0, NF_pad - NF))).astype(compute_dtype)

    b_fused = jnp.concatenate(list(params["conv_b"]))          # (NF,)
    b_fused = jnp.pad(b_fused, (0, NF_pad - NF)).reshape(1, NF_pad)
    b_fused = b_fused.astype(jnp.float32)

    # Validity mask: column g*F+f is valid for rows t < L - k_g + 1.
    thr = jnp.concatenate(
        [jnp.full((F,), L - k + 1, jnp.int32) for k in kernel_sizes])
    thr = jnp.pad(thr, (0, NF_pad - NF))                       # padded filters -> 0
    rows = jnp.arange(Lout_pad, dtype=jnp.int32)[:, None]
    mask = (rows < thr[None, :]).astype(jnp.float32)           # (Lout_pad, NF_pad)

    fc_wt = jnp.zeros((NF_pad, C_pad), compute_dtype)
    fc_wt = fc_wt.at[:NF, :C].set(params["fc_w"].T.astype(compute_dtype))
    fc_b = jnp.zeros((1, C_pad), jnp.float32).at[0, :C].set(params["fc_b"])

    flops = (2 * B_pad * Lout_pad * (k_max * E) * NF_pad
             + 2 * B_pad * NF_pad * C_pad)
    bytes_acc = int(x.size * x.dtype.itemsize
                    + w_fused.size * w_fused.dtype.itemsize
                    + b_fused.size * 4 + mask.size * 4
                    + fc_wt.size * fc_wt.dtype.itemsize + fc_b.size * 4
                    + B_pad * C_pad * 4)

    kernel = functools.partial(_textcnn_kernel, k_max)
    out = pl.pallas_call(
        kernel,
        out_shape=jax.ShapeDtypeStruct((B_pad, C_pad), jnp.float32),
        grid=(B_pad // TB,),
        in_specs=[
            pl.BlockSpec((TB, L_pad, E), lambda i: (i, 0, 0)),      # x (tiled)
            pl.BlockSpec((k_max * E, NF_pad), lambda i: (0, 0)),    # conv W
            pl.BlockSpec((1, NF_pad), lambda i: (0, 0)),            # conv bias
            pl.BlockSpec((Lout_pad, NF_pad), lambda i: (0, 0)),     # mask
            pl.BlockSpec((NF_pad, C_pad), lambda i: (0, 0)),        # fc W^T
            pl.BlockSpec((1, C_pad), lambda i: (0, 0)),             # fc bias
        ],
        out_specs=pl.BlockSpec((TB, C_pad), lambda i: (i, 0)),
        compiler_params=pltpu.CompilerParams(
            dimension_semantics=("parallel",)),
        cost_estimate=pl.CostEstimate(
            flops=flops, transcendentals=0, bytes_accessed=bytes_acc),
    )(x, w_fused, b_fused, mask, fc_wt, fc_b)
    return out[:B, :C]


def ref_forward(tokens, params, kernel_sizes):
    """Pure-JAX reference mirroring PyTorch semantics (eval mode)."""
    x = jnp.take(params["embedding"], tokens, axis=0)         # (B, L, E)
    xt = jnp.transpose(x, (0, 2, 1))                           # (B, E, L) NCL
    feats = []
    for w, b, k in zip(params["conv_w"], params["conv_b"], kernel_sizes):
        out = jax.lax.conv_general_dilated(
            xt, w, window_strides=(1,), padding="VALID",
            dimension_numbers=("NCH", "OIH", "NCH"))           # (B, F, L-k+1)
        out = out + b[None, :, None]
        out = jnp.max(jnp.maximum(out, 0.0), axis=2)           # (B, F)
        feats.append(out)
    f = jnp.concatenate(feats, axis=1)                         # (B, n*F)
    return f @ params["fc_w"].T + params["fc_b"]


def init_params(key, vocab_size, embed_dim, num_classes, kernel_sizes,
                num_filters):
    keys = jax.random.split(key, 3 + 2 * len(kernel_sizes))
    params = {
        "embedding": jax.random.normal(
            keys[0], (vocab_size, embed_dim), jnp.float32),
        "conv_w": [],
        "conv_b": [],
    }
    for i, k in enumerate(kernel_sizes):
        params["conv_w"].append(0.1 * jax.random.normal(
            keys[1 + 2 * i], (num_filters, embed_dim, k), jnp.float32))
        params["conv_b"].append(0.1 * jax.random.normal(
            keys[2 + 2 * i], (num_filters,), jnp.float32))
    in_feat = len(kernel_sizes) * num_filters
    params["fc_w"] = 0.1 * jax.random.normal(
        keys[-2], (num_classes, in_feat), jnp.float32)
    params["fc_b"] = 0.1 * jax.random.normal(
        keys[-1], (num_classes,), jnp.float32)
    return params


if __name__ == "__main__":
    vocab_size, embed_dim, num_classes = 50, 32, 4
    kernel_sizes = (3, 4, 5)
    num_filters = 8
    B, L = 2, 16

    key = jax.random.PRNGKey(0)
    k_par, k_tok = jax.random.split(key)
    params = init_params(k_par, vocab_size, embed_dim, num_classes,
                         kernel_sizes, num_filters)
    tokens = jax.random.randint(k_tok, (B, L), 0, vocab_size, jnp.int32)
    length = jnp.full((B,), L, jnp.int32)   # unused, as in the PyTorch forward

    # f32 path (tight tolerance vs. pure-JAX reference).
    out = textcnn_forward(tokens, length, params, kernel_sizes)
    out = jax.block_until_ready(out)
    ref = ref_forward(tokens, params, kernel_sizes)
    assert out.shape == (B, num_classes)
    assert jnp.allclose(out, ref, atol=1e-3, rtol=1e-3), (out, ref)

    # bf16 MXU-operand path (v6e/v7x native); f32 accumulate -> loose tolerance.
    out_bf16 = jax.block_until_ready(
        textcnn_forward(tokens, length, params, kernel_sizes,
                        compute_dtype=jnp.bfloat16))
    assert out_bf16.shape == (B, num_classes)
    assert jnp.allclose(out_bf16, ref, atol=1e-1, rtol=1e-1), (out_bf16, ref)

    print("KERNEL_OK")
</pallas_src>

<mosaic_0001>
module attributes {stable_mosaic.version = 11 : i64} {
  func.func @_textcnn_kernel(%arg0: i32, %arg1: memref<2x20x32xf32, #tpu.memory_space<vmem>>, %arg2: memref<160x128xf32, #tpu.memory_space<vmem>>, %arg3: memref<1x128xf32, #tpu.memory_space<vmem>>, %arg4: memref<16x128xf32, #tpu.memory_space<vmem>>, %arg5: memref<128x128xf32, #tpu.memory_space<vmem>>, %arg6: memref<1x128xf32, #tpu.memory_space<vmem>>, %arg7: memref<2x128xf32, #tpu.memory_space<vmem>>) attributes {dimension_semantics = [#tpu.dimension_semantics<parallel>], iteration_bounds = array<i64: 1>, scalar_prefetch = 0 : i64, scratch_operands = 0 : i64, tpu.core_type = #tpu.core_type<tc>, window_params = [{transform_indices = @transform_0, window_bounds = array<i64: 2, 20, 32>}, {pipeline_mode = #tpu.pipeline_mode<synchronous>, transform_indices = @transform_1, window_bounds = array<i64: 160, 128>}, {pipeline_mode = #tpu.pipeline_mode<synchronous>, transform_indices = @transform_2, window_bounds = array<i64: 1, 128>}, {pipeline_mode = #tpu.pipeline_mode<synchronous>, transform_indices = @transform_3, window_bounds = array<i64: 16, 128>}, {pipeline_mode = #tpu.pipeline_mode<synchronous>, transform_indices = @transform_4, window_bounds = array<i64: 128, 128>}, {pipeline_mode = #tpu.pipeline_mode<synchronous>, transform_indices = @transform_5, window_bounds = array<i64: 1, 128>}, {transform_indices = @transform_6, window_bounds = array<i64: 2, 128>}]} {
    %c0 = arith.constant 0 : index
    %c0_0 = arith.constant 0 : index
    %c0_1 = arith.constant 0 : index
    %0 = vector.load %arg1[%c0, %c0_0, %c0_1] : memref<2x20x32xf32, #tpu.memory_space<vmem>>, vector<2x20x32xf32>
    %1 = vector.extract_strided_slice %0 {offsets = [0, 0, 0], sizes = [2, 16, 32], strides = [1, 1, 1]} : vector<2x20x32xf32> to vector<2x16x32xf32>
    %2 = vector.extract_strided_slice %0 {offsets = [0, 1, 0], sizes = [2, 16, 32], strides = [1, 1, 1]} : vector<2x20x32xf32> to vector<2x16x32xf32>
    %3 = vector.extract_strided_slice %0 {offsets = [0, 2, 0], sizes = [2, 16, 32], strides = [1, 1, 1]} : vector<2x20x32xf32> to vector<2x16x32xf32>
    %4 = vector.extract_strided_slice %0 {offsets = [0, 3, 0], sizes = [2, 16, 32], strides = [1, 1, 1]} : vector<2x20x32xf32> to vector<2x16x32xf32>
    %5 = vector.extract_strided_slice %0 {offsets = [0, 4, 0], sizes = [2, 16, 32], strides = [1, 1, 1]} : vector<2x20x32xf32> to vector<2x16x32xf32>
    %6 = tpu.concatenate %1, %2, %3, %4, %5 in 2 : vector<2x16x32xf32>, vector<2x16x32xf32>, vector<2x16x32xf32>, vector<2x16x32xf32>, vector<2x16x32xf32> -> vector<2x16x160xf32>
    %7 = vector.shape_cast %6 : vector<2x16x160xf32> to vector<32x160xf32>
    %c0_2 = arith.constant 0 : index
    %c0_3 = arith.constant 0 : index
    %8 = vector.load %arg2[%c0_2, %c0_3] : memref<160x128xf32, #tpu.memory_space<vmem>>, vector<160x128xf32>
    %cst = arith.constant dense<0.000000e+00> : vector<32x128xf32>
    %9 = tpu.matmul %7, %8, %cst {dimension_numbers = #tpu.dot_dimension_numbers<[1], [0], [0], [1], [0, 0, 1, 1], [], []>} : vector<32x160xf32>, vector<160x128xf32>, vector<32x128xf32> -> vector<32x128xf32>
    %c0_4 = arith.constant 0 : index
    %c0_5 = arith.constant 0 : index
    %10 = vector.load %arg3[%c0_4, %c0_5] : memref<1x128xf32, #tpu.memory_space<vmem>>, vector<1x128xf32>
    %11 = vector.broadcast %10 : vector<1x128xf32> to vector<32x128xf32>
    %12 = arith.addf %9, %11 : vector<32x128xf32>
    %cst_6 = arith.constant 0.000000e+00 : f32
    %13 = vector.broadcast %cst_6 : f32 to vector<32x128xf32>
    %14 = arith.maximumf %12, %13 : vector<32x128xf32>
    %15 = vector.shape_cast %14 : vector<32x128xf32> to vector<2x16x128xf32>
    %c0_7 = arith.constant 0 : index
    %c0_8 = arith.constant 0 : index
    %16 = vector.load %arg4[%c0_7, %c0_8] : memref<16x128xf32, #tpu.memory_space<vmem>>, vector<16x128xf32>
    %17 = vector.shape_cast %16 : vector<16x128xf32> to vector<1x16x128xf32>
    %18 = vector.broadcast %17 : vector<1x16x128xf32> to vector<2x16x128xf32>
    %19 = arith.mulf %15, %18 : vector<2x16x128xf32>
    %cst_9 = arith.constant dense<0xFF800000> : vector<2x128xf32>
    %20 = vector.multi_reduction <maximumf>, %19, %cst_9 [1] : vector<2x16x128xf32> to vector<2x128xf32>
    %c0_10 = arith.constant 0 : index
    %c0_11 = arith.constant 0 : index
    %21 = vector.load %arg5[%c0_10, %c0_11] : memref<128x128xf32, #tpu.memory_space<vmem>>, vector<128x128xf32>
    %cst_12 = arith.constant dense<0.000000e+00> : vector<2x128xf32>
    %22 = tpu.matmul %20, %21, %cst_12 {dimension_numbers = #tpu.dot_dimension_numbers<[1], [0], [0], [1], [0, 0, 1, 1], [], []>} : vector<2x128xf32>, vector<128x128xf32>, vector<2x128xf32> -> vector<2x128xf32>
    %c0_13 = arith.constant 0 : index
    %c0_14 = arith.constant 0 : index
    %23 = vector.load %arg6[%c0_13, %c0_14] : memref<1x128xf32, #tpu.memory_space<vmem>>, vector<1x128xf32>
    %24 = vector.broadcast %23 : vector<1x128xf32> to vector<2x128xf32>
    %25 = arith.addf %22, %24 : vector<2x128xf32>
    %c0_15 = arith.constant 0 : index
    %c0_16 = arith.constant 0 : index
    %26 = vector.load %arg7[%c0_15, %c0_16] : memref<2x128xf32, #tpu.memory_space<vmem>>, vector<2x128xf32>
    tpu.vector_store %arg7[%c0_15, %c0_16], %25 {strides = array<i32>} : memref<2x128xf32, #tpu.memory_space<vmem>>, vector<2x128xf32>,
    return
  }
  func.func @transform_0(%arg0: i32) -> (i32, i32, i32) {
    %c0_i32 = arith.constant 0 : i32
    %c0_i32_0 = arith.constant 0 : i32
    %c0_i32_1 = arith.constant 0 : i32
    return %arg0, %c0_i32, %c0_i32_0 : i32, i32, i32
  }
  func.func @transform_1(%arg0: i32) -> (i32, i32) {
    %c0_i32 = arith.constant 0 : i32
    %c0_i32_0 = arith.constant 0 : i32
    %c0_i32_1 = arith.constant 0 : i32
    return %c0_i32, %c0_i32_0 : i32, i32
  }
  func.func @transform_2(%arg0: i32) -> (i32, i32) {
    %c0_i32 = arith.constant 0 : i32
    %c0_i32_0 = arith.constant 0 : i32
    %c0_i32_1 = arith.constant 0 : i32
    return %c0_i32, %c0_i32_0 : i32, i32
  }
  func.func @transform_3(%arg0: i32) -> (i32, i32) {
    %c0_i32 = arith.constant 0 : i32
    %c0_i32_0 = arith.constant 0 : i32
    %c0_i32_1 = arith.constant 0 : i32
    return %c0_i32, %c0_i32_0 : i32, i32
  }
  func.func @transform_4(%arg0: i32) -> (i32, i32) {
    %c0_i32 = arith.constant 0 : i32
    %c0_i32_0 = arith.constant 0 : i32
    %c0_i32_1 = arith.constant 0 : i32
    return %c0_i32, %c0_i32_0 : i32, i32
  }
  func.func @transform_5(%arg0: i32) -> (i32, i32) {
    %c0_i32 = arith.constant 0 : i32
    %c0_i32_0 = arith.constant 0 : i32
    %c0_i32_1 = arith.constant 0 : i32
    return %c0_i32, %c0_i32_0 : i32, i32
  }
  func.func @transform_6(%arg0: i32) -> (i32, i32) {
    %c0_i32 = arith.constant 0 : i32
    %c0_i32_0 = arith.constant 0 : i32
    return %arg0, %c0_i32 : i32, i32
  }
}

</mosaic_0001>

<llo_original>
// kernel: tpu_custom_call.1
$region0: #{tpu_custom_call.1}
  #allocation0 [shape = 'u32[]', space=smem, size = 0x4, offset = 0x4, fixed_abs, tag = 'smem constant byte address 0x4 - core index']
  #allocation1 [shape = 'u32[72,128]{1,0:T(1,128)}', space=vmem, size = 0x9000, scoped, tag = 'internal scratch']
  %s0 = inlined_call_operand.vmem [shape: f32[2,20,32], index: 0, kind: input, shape index: {}]
  %s1 = inlined_call_operand.hbm [shape: f32[160,128], index: 1, kind: input, shape index: {}]
  %s2 = inlined_call_operand.vmem [shape: f32[1,128], index: 2, kind: input, shape index: {}]
  %s3 = inlined_call_operand.vmem [shape: f32[16,128], index: 3, kind: input, shape index: {}]
  %s4 = inlined_call_operand.hbm [shape: f32[128,128], index: 4, kind: input, shape index: {}]
  %s5 = inlined_call_operand.vmem [shape: f32[1,128], index: 5, kind: input, shape index: {}]
  %s6 = inlined_call_operand.hbm [shape: f32[2,128], index: 6, kind: output, shape index: {}]
  %s7 = sld [smem:[#allocation0]]
  $region42: #{tpu_custom_call.1} parent=0
    _
  %s9 = ssub.s32 1, %s7
  %s10 = scalar_select 0, %s9, %s7
  $region1: #{tpu_custom_call.1} parent=0
    #allocation2 [shape = 'u8[81920]{0}', space=vmem, size = 0x14000, scoped, tag = 'input window, operand 1, single buffered']
    #allocation3 [shape = 's32[1]{0}', space=sflag, size = 0x4, scoped, tag = 'scoped memory for tpu_custom_call.1']
    #allocation4 [shape = 's32[1]{0}', space=sflag, size = 0x4, scoped, tag = 'scoped memory for tpu_custom_call.1']
    #allocation5 [shape = 'u8[65536]{0}', space=vmem, size = 0x10000, scoped, tag = 'input window, operand 4, single buffered']
    #allocation6 [shape = 's32[1]{0}', space=sflag, size = 0x4, scoped, tag = 'scoped memory for tpu_custom_call.1']
    #allocation7 [shape = 'u8[1024]{0}', space=vmem, size = 0x400, scoped, tag = 'output window, operand 0, single buffered']
    %11 = vsyncpa [#allocation3], 0
    %12 = vsyncpa [#allocation6], 0
    %13 = vsyncpa [#allocation4], 0
    // Predicated region
    $region2: #{tpu_custom_call.1} parent=1 // pred_check
      _
    $region3: #{tpu_custom_call.1} parent=1 // pred_check_branch
      %15 = sbr.rel (0) target = $region5
    $region4: #{tpu_custom_call.1} parent=1 // pred_region
      _
    $region5: #{tpu_custom_call.1} parent=1 // pred_fallthru
      _
    // Predicated region
    $region6: #{tpu_custom_call.1} parent=1 // pred_check
      _
    $region7: #{tpu_custom_call.1} parent=1 // pred_check_branch
      %17 = sbr.rel (0) target = $region9
    $region8: #{tpu_custom_call.1} parent=1 // pred_region
      %19 = vsyncadd [#allocation3], 0
      %s20 = sshll.u32 %s1, 4
      %s21 = int_to_ptr.hbm [resolvable:$true] %s20
      %s22 = sshll.u32 [#allocation2], 4
      %s23 = int_to_ptr.vmem [resolvable:$true] %s22
      %28 = dma.hbm_to_vmem [thread:$0]  %s21, 2560, %s23, [#allocation3], 128, 128, 8
    $region9: #{tpu_custom_call.1} parent=1 // pred_fallthru
      _
    // Predicated region
    $region10: #{tpu_custom_call.1} parent=1 // pred_check
      _
    $region11: #{tpu_custom_call.1} parent=1 // pred_check_branch
      %30 = sbr.rel (0) target = $region13
    $region12: #{tpu_custom_call.1} parent=1 // pred_region
      _
    $region13: #{tpu_custom_call.1} parent=1 // pred_fallthru
      _
    // Predicated region
    $region14: #{tpu_custom_call.1} parent=1 // pred_check
      _
    $region15: #{tpu_custom_call.1} parent=1 // pred_check_branch
      %32 = sbr.rel (0) target = $region17
    $region16: #{tpu_custom_call.1} parent=1 // pred_region
      _
    $region17: #{tpu_custom_call.1} parent=1 // pred_fallthru
      _
    // Predicated region
    $region18: #{tpu_custom_call.1} parent=1 // pred_check
      _
    $region19: #{tpu_custom_call.1} parent=1 // pred_check_branch
      %34 = sbr.rel (0) target = $region21
    $region20: #{tpu_custom_call.1} parent=1 // pred_region
      %36 = vsyncadd [#allocation6], 0
      %s37 = sshll.u32 %s4, 4
      %s38 = int_to_ptr.hbm [resolvable:$true] %s37
      %s39 = sshll.u32 [#allocation5], 4
      %s40 = int_to_ptr.vmem [resolvable:$true] %s39
      %45 = dma.hbm_to_vmem [thread:$0]  %s38, 2048, %s40, [#allocation6], 128, 128, 8
    $region21: #{tpu_custom_call.1} parent=1 // pred_fallthru
      _
    // Predicated region
    $region22: #{tpu_custom_call.1} parent=1 // pred_check
      _
    $region23: #{tpu_custom_call.1} parent=1 // pred_check_branch
      %47 = sbr.rel (0) target = $region25
    $region24: #{tpu_custom_call.1} parent=1 // pred_region
      _
    $region25: #{tpu_custom_call.1} parent=1 // pred_fallthru
      _
    // Predicated region
    $region26: #{tpu_custom_call.1} parent=1 // pred_check
      _
    $region27: #{tpu_custom_call.1} parent=1 // pred_check_branch
      %49 = sbr.rel (0) target = $region29
    $region28: #{tpu_custom_call.1} parent=1 // pred_region
      %51 = dma.done [#allocation3], 2560
    $region29: #{tpu_custom_call.1} parent=1 // pred_fallthru
      _
    // Predicated region
    $region30: #{tpu_custom_call.1} parent=1 // pred_check
      _
    $region31: #{tpu_custom_call.1} parent=1 // pred_check_branch
      %53 = sbr.rel (0) target = $region33
    $region32: #{tpu_custom_call.1} parent=1 // pred_region
      %55 = dma.done [#allocation6], 2048
    $region33: #{tpu_custom_call.1} parent=1 // pred_fallthru
      _
    %v56 = vld [vmem:[%s0] sm:$0xff]
    %v57 = vld [vmem:[%s0 + $0x8] sm:$0xff]
    %v58 = vld [vmem:[%s0 + $0x10] sm:$0xf]
    %v59 = vld [vmem:[%s0 + $0x18] sm:$0xff]
    %v60 = vld [vmem:[%s0 + $0x20] sm:$0xff]
    %v61 = vld [vmem:[%s0 + $0x28] sm:$0xf]
    %vm68 = vcmask 1046528
    %v69 = vrot.slane %v56, 1
    %v70 = vrot.slane %v57, 1
    %v71 = vsel %vm68, %v69, %v70
    %v72 = vrot.slane %v58, 1
    %v73 = vsel %vm68, %v70, %v72
    %v74 = vrot.slane %v59, 1
    %v75 = vrot.slane %v60, 1
    %v76 = vsel %vm68, %v74, %v75
    %v77 = vrot.slane %v61, 1
    %v78 = vsel %vm68, %v75, %v77
    %79 = vrot.lane.b32.xlu0 %v71, 32
    %v80 = vpop.permute.xlu0 %79
    %81 = vrot.lane.b32.xlu0 %v73, 32
    %v82 = vpop.permute.xlu0 %81
    %83 = vrot.lane.b32.xlu0 %v76, 32
    %v84 = vpop.permute.xlu0 %83
    %85 = vrot.lane.b32.xlu0 %v78, 32
    %v86 = vpop.permute.xlu0 %85
    %vm91 = vcmask 1045504
    %v92 = vrot.slane %v56, 2
    %v93 = vrot.slane %v57, 2
    %v94 = vsel %vm91, %v92, %v93
    %v95 = vrot.slane %v58, 2
    %v96 = vsel %vm91, %v93, %v95
    %v97 = vrot.slane %v59, 2
    %v98 = vrot.slane %v60, 2
    %v99 = vsel %vm91, %v97, %v98
    %v100 = vrot.slane %v61, 2
    %v101 = vsel %vm91, %v98, %v100
    %102 = vrot.lane.b32.xlu0 %v94, 64
    %v103 = vpop.permute.xlu0 %102
    %104 = vrot.lane.b32.xlu0 %v96, 64
    %v105 = vpop.permute.xlu0 %104
    %106 = vrot.lane.b32.xlu0 %v99, 64
    %v107 = vpop.permute.xlu0 %106
    %108 = vrot.lane.b32.xlu0 %v101, 64
    %v109 = vpop.permute.xlu0 %108
    %vm114 = vcmask 1044480
    %v115 = vrot.slane %v56, 3
    %v116 = vrot.slane %v57, 3
    %v117 = vsel %vm114, %v115, %v116
    %v118 = vrot.slane %v58, 3
    %v119 = vsel %vm114, %v116, %v118
    %v120 = vrot.slane %v59, 3
    %v121 = vrot.slane %v60, 3
    %v122 = vsel %vm114, %v120, %v121
    %v123 = vrot.slane %v61, 3
    %v124 = vsel %vm114, %v121, %v123
    %125 = vrot.lane.b32.xlu0 %v117, 96
    %v126 = vpop.permute.xlu0 %125
    %127 = vrot.lane.b32.xlu0 %v119, 96
    %v128 = vpop.permute.xlu0 %127
    %129 = vrot.lane.b32.xlu0 %v122, 96
    %v130 = vpop.permute.xlu0 %129
    %131 = vrot.lane.b32.xlu0 %v124, 96
    %v132 = vpop.permute.xlu0 %131
    %vm137 = vcmask 1043456
    %v138 = vrot.slane %v56, 4
    %v139 = vrot.slane %v57, 4
    %v140 = vsel %vm137, %v138, %v139
    %v141 = vrot.slane %v58, 4
    %v142 = vsel %vm137, %v139, %v141
    %v143 = vrot.slane %v59, 4
    %v144 = vrot.slane %v60, 4
    %v145 = vsel %vm137, %v143, %v144
    %v146 = vrot.slane %v61, 4
    %v147 = vsel %vm137, %v144, %v146
    %vm148 = vcmask 261120
    %v149 = vsel %vm148, %v56, %v80
    %v150 = vsel %vm148, %v57, %v82
    %v151 = vsel %vm148, %v59, %v84
    %v152 = vsel %vm148, %v60, %v86
    %vm153 = vcmask 523264
    %v154 = vsel %vm153, %v149, %v103
    %v155 = vsel %vm153, %v150, %v105
    %v156 = vsel %vm153, %v151, %v107
    %v157 = vsel %vm153, %v152, %v109
    %vm158 = vcmask 785408
    %v159 = vsel %vm158, %v154, %v126
    %v160 = vsel %vm158, %v155, %v128
    %v161 = vsel %vm158, %v156, %v130
    %v162 = vsel %vm158, %v157, %v132
    %v163 = vld [vmem:[#allocation2] sm:$0xff]
    %v164 = vld [vmem:[#allocation2 + $0x8] sm:$0xff]
    %v165 = vld [vmem:[#allocation2 + $0x10] sm:$0xff]
    %v166 = vld [vmem:[#allocation2 + $0x18] sm:$0xff]
    %v167 = vld [vmem:[#allocation2 + $0x20] sm:$0xff]
    %v168 = vld [vmem:[#allocation2 + $0x28] sm:$0xff]
    %v169 = vld [vmem:[#allocation2 + $0x30] sm:$0xff]
    %v170 = vld [vmem:[#allocation2 + $0x38] sm:$0xff]
    %v171 = vld [vmem:[#allocation2 + $0x40] sm:$0xff]
    %v172 = vld [vmem:[#allocation2 + $0x48] sm:$0xff]
    %v173 = vld [vmem:[#allocation2 + $0x50] sm:$0xff]
    %v174 = vld [vmem:[#allocation2 + $0x58] sm:$0xff]
    %v175 = vld [vmem:[#allocation2 + $0x60] sm:$0xff]
    %v176 = vld [vmem:[#allocation2 + $0x68] sm:$0xff]
    %v177 = vld [vmem:[#allocation2 + $0x70] sm:$0xff]
    %v178 = vld [vmem:[#allocation2 + $0x78] sm:$0xff]
    %v179 = vld [vmem:[#allocation2 + $0x80] sm:$0xff]
    %v180 = vld [vmem:[#allocation2 + $0x88] sm:$0xff]
    %v181 = vld [vmem:[#allocation2 + $0x90] sm:$0xff]
    %v182 = vld [vmem:[#allocation2 + $0x98] sm:$0xff]
    %v183 = vld [vmem:[%s2] sm:$0x1]
    %v185 = vperm.slane %v183, 0
    %v187 = vsel %vm148, %v140, 0
    %v189 = vsel %vm148, %v142, 0
    %v191 = vsel %vm148, %v145, 0
    %v193 = vsel %vm148, %v147, 0
    %195 = vmatpush.msra.mxu0 %v178
    %196 = vmatpush.msra.mxu0 %v177
    %197 = vmatpush.msra.mxu0 %v176
    %198 = vmatpush.msra.mxu0 %v175
    %199 = vmatpush.msra.mxu0 %v174
    %200 = vmatpush.msra.mxu0 %v173
    %201 = vmatpush.msra.mxu0 %v172
    %202 = vmatpush.msra.mxu0 %v171
    %203 = vmatpush.msra.mxu0 %v170
    %204 = vmatpush.msra.mxu0 %v169
    %205 = vmatpush.msra.mxu0 %v168
    %206 = vmatpush.msra.mxu0 %v167
    %207 = vmatpush.msra.mxu0 %v166
    %208 = vmatpush.msra.mxu0 %v165
    %209 = vmatpush.msra.mxu0 %v164
    %210 = vmatpush.msra.mxu0 %v163
    %211 = vmatmul.f32.gmra.mxu0 %v159
    %v212 = vpop.f32.mrf.mxu0
    %v213 = vadd.f32 %v185, %v212
    %214 = vmatmul.f32.gmra.mxu0 %v160
    %v215 = vpop.f32.mrf.mxu0
    %v216 = vadd.f32 %v185, %v215
    %217 = vmatmul.f32.gmra.mxu0 %v161
    %v218 = vpop.f32.mrf.mxu0
    %v219 = vadd.f32 %v185, %v218
    %220 = vmatmul.f32.gmra.mxu0 %v162
    %v221 = vpop.f32.mrf.mxu0
    %v222 = vadd.f32 %v185, %v221
    %223 = vdwg.mxu0
    %224 = vmatpush.msra.mxu0 0.0
    %225 = vmatpush.msra.mxu0 0.0
    %226 = vmatpush.msra.mxu0 0.0
    %227 = vmatpush.msra.mxu0 0.0
    %228 = vmatpush.msra.mxu0 0.0
    %229 = vmatpush.msra.mxu0 0.0
    %230 = vmatpush.msra.mxu0 0.0
    %231 = vmatpush.msra.mxu0 0.0
    %232 = vmatpush.msra.mxu0 0.0
    %233 = vmatpush.msra.mxu0 0.0
    %234 = vmatpush.msra.mxu0 0.0
    %235 = vmatpush.msra.mxu0 0.0
    %236 = vmatpush.msra.mxu0 %v182
    %237 = vmatpush.msra.mxu0 %v181
    %238 = vmatpush.msra.mxu0 %v180
    %239 = vmatpush.msra.mxu0 %v179
    %240 = vmatmul.f32.gmra.mxu0 %v187
    %v241 = vpop.f32.mrf.mxu0
    %v242 = vadd.f32 %v213, %v241
    %243 = vmatmul.f32.gmra.mxu0 %v189
    %v244 = vpop.f32.mrf.mxu0
    %v245 = vadd.f32 %v216, %v244
    %246 = vmatmul.f32.gmra.mxu0 %v191
    %v247 = vpop.f32.mrf.mxu0
    %v248 = vadd.f32 %v219, %v247
    %249 = vmatmul.f32.gmra.mxu0 %v193
    %v250 = vpop.f32.mrf.mxu0
    %v251 = vadd.f32 %v222, %v250
    %252 = vdwg.mxu0
    %v253 = vmax.f32 %v242, 0.0
    %v254 = vmax.f32 %v245, 0.0
    %v255 = vmax.f32 %v248, 0.0
    %v256 = vmax.f32 %v251, 0.0
    %v257 = vld [vmem:[%s3] sm:$0xff]
    %v258 = vld [vmem:[%s3 + $0x8] sm:$0xff]
    %v259 = vmul.f32 %v253, %v257
    %v260 = vmul.f32 %v254, %v258
    %v261 = vmul.f32 %v255, %v257
    %v262 = vmul.f32 %v256, %v258
    %v263 = vmax.f32 %v259, %v260
    %v264 = vrot.slane %v263, 4
    %v265 = vmax.f32 %v263, %v264
    %v266 = vrot.slane %v265, 2
    %v267 = vmax.f32 %v265, %v266
    %v268 = vrot.slane %v267, 1
    %v269 = vmax.f32 %v267, %v268
    %v270 = vmax.f32 %v261, %v262
    %v271 = vrot.slane %v270, 4
    %v272 = vmax.f32 %v270, %v271
    %v273 = vrot.slane %v272, 2
    %v274 = vmax.f32 %v272, %v273
    %v275 = vrot.slane %v274, 1
    %v276 = vmax.f32 %v274, %v275
    %v277 = vld [vmem:[#allocation5] sm:$0xff]
    %v278 = vld [vmem:[#allocation5 + $0x8] sm:$0xff]
    %v279 = vld [vmem:[#allocation5 + $0x10] sm:$0xff]
    %v280 = vld [vmem:[#allocation5 + $0x18] sm:$0xff]
    %v281 = vld [vmem:[#allocation5 + $0x20] sm:$0xff]
    %v282 = vld [vmem:[#allocation5 + $0x28] sm:$0xff]
    %v283 = vld [vmem:[#allocation5 + $0x30] sm:$0xff]
    %v284 = vld [vmem:[#allocation5 + $0x38] sm:$0xff]
    %v285 = vld [vmem:[#allocation5 + $0x40] sm:$0xff]
    %v286 = vld [vmem:[#allocation5 + $0x48] sm:$0xff]
    %v287 = vld [vmem:[#allocation5 + $0x50] sm:$0xff]
    %v288 = vld [vmem:[#allocation5 + $0x58] sm:$0xff]
    %v289 = vld [vmem:[#allocation5 + $0x60] sm:$0xff]
    %v290 = vld [vmem:[#allocation5 + $0x68] sm:$0xff]
    %v291 = vld [vmem:[#allocation5 + $0x70] sm:$0xff]
    %v292 = vld [vmem:[#allocation5 + $0x78] sm:$0xff]
    %v293 = vld [vmem:[%s5] sm:$0x1]
    %v295 = vperm.slane %v293, 0
    %vm299 = vcmask 1041409
    %v300 = vsel %vm299, %v276, %v269
    %302 = vmatpush.msra.mxu0 %v292
    %303 = vmatpush.msra.mxu0 %v291
    %304 = vmatpush.msra.mxu0 %v290
    %305 = vmatpush.msra.mxu0 %v289
    %306 = vmatpush.msra.mxu0 %v288
    %307 = vmatpush.msra.mxu0 %v287
    %308 = vmatpush.msra.mxu0 %v286
    %309 = vmatpush.msra.mxu0 %v285
    %310 = vmatpush.msra.mxu0 %v284
    %311 = vmatpush.msra.mxu0 %v283
    %312 = vmatpush.msra.mxu0 %v282
    %313 = vmatpush.msra.mxu0 %v281
    %314 = vmatpush.msra.mxu0 %v280
    %315 = vmatpush.msra.mxu0 %v279
    %316 = vmatpush.msra.mxu0 %v278
    %317 = vmatpush.msra.mxu0 %v277
    %318 = vmatmul.f32.gmra.mxu0 %v300
    %v319 = vpop.f32.mrf.mxu0
    %v320 = vadd.f32 %v295, %v319
    %321 = vdwg.mxu0
    %322 = vst [vmem:[#allocation7] sm:$0x3] %v320
    // Predicated region
    $region34: #{tpu_custom_call.1} parent=1 // pred_check
      _
    $region35: #{tpu_custom_call.1} parent=1 // pred_check_branch
      %324 = sbr.rel (0) target = $region37
    $region36: #{tpu_custom_call.1} parent=1 // pred_region
      %326 = vsyncadd [#allocation4], 0
      %s328 = sshll.u32 [#allocation7], 4
      %s329 = int_to_ptr.vmem [resolvable:$true] %s328
      %s330 = sshll.u32 %s6, 4
      %s331 = int_to_ptr.hbm [resolvable:$true] %s330
      %333 = dma.vmem_to_hbm [thread:$0]  %s329, 32, %s331, [#allocation4]
    $region37: #{tpu_custom_call.1} parent=1 // pred_fallthru
      _
    // Predicated region
    $region38: #{tpu_custom_call.1} parent=1 // pred_check
      _
    $region39: #{tpu_custom_call.1} parent=1 // pred_check_branch
      %335 = sbr.rel (0) target = $region41
    $region40: #{tpu_custom_call.1} parent=1 // pred_region
      %337 = dma.done [#allocation4], 32
    $region41: #{tpu_custom_call.1} parent=1 // pred_fallthru
      _
    %338 = vsyncpa [#allocation3], 1
    %339 = vsyncpa [#allocation6], 1
    %340 = vsyncpa [#allocation4], 1

</llo_original>
